<compile_context>
chip_gen: v6e
topology: v6e:2x2x1
jax: 0.10.0
libtpu: 0.0.40
codegen_flags: <defaults>
</compile_context>

<pallas_src>
import jax
import jax.numpy as jnp
from jax.experimental import pallas as pl
from jax.experimental.pallas import tpu as pltpu


# ---------------------------------------------------------------------------
# Kernel
# ---------------------------------------------------------------------------
def _cse_kernel(x_ref, w1_ref, b1_ref, w2_ref, b2_ref, o_ref, acc_ref):
    """Grid = (N tiles, HW tiles); HW (reduction) axis last.

    x_ref:   (tn, C, thw) f32 tile of the input
    w1_ref:  (C, C/2)   folded conv1 weight (includes BN1 scale and 1/HW)
    b1_ref:  (1, C/2)   folded conv1 bias   (includes BN1 shift)
    w2_ref:  (C/2, C)   folded conv2 weight (includes BN2 scale)
    b2_ref:  (1, C)     folded conv2 bias   (includes BN2 shift)
    o_ref:   (tn, C)    output block (resident across the HW axis)
    acc_ref: (tn, C)    VMEM scratch accumulating the raw spatial sum
    """
    k = pl.program_id(1)

    @pl.when(k == 0)
    def _init():
        acc_ref[...] = jnp.zeros_like(acc_ref)

    # Partial spatial sum of this HW tile (reduction over the lane axis).
    acc_ref[...] += jnp.sum(x_ref[...], axis=-1)

    @pl.when(k == pl.num_programs(1) - 1)
    def _finalize():
        pooled = acc_ref[...]                               # raw sum; 1/HW folded into w1'
        h = jnp.dot(pooled, w1_ref[...],
                    preferred_element_type=jnp.float32) + b1_ref[...]
        h = jnp.maximum(h, 0.0)                             # ReLU
        y = jnp.dot(h, w2_ref[...],
                    preferred_element_type=jnp.float32) + b2_ref[...]
        o_ref[...] = jax.nn.sigmoid(y)


# ---------------------------------------------------------------------------
# Tile selection
# ---------------------------------------------------------------------------
def _pick_tiles(N, C, HW, target_block_bytes=4 << 20):
    """Pick (tn, thw) so one x block is ~<= target_block_bytes and thw is a
    multiple of 128 that divides HW (fallback: full HW)."""
    tn = N if N <= 8 else 8

    if HW % 128 != 0:
        thw = HW  # full extent — always a legal block shape
    else:
        max_elems = max(128, target_block_bytes // (tn * C * 4))
        if HW <= max_elems:
            thw = HW
        else:
            thw = 128
            t = 256
            while t <= max_elems:
                if HW % t == 0:
                    thw = t
                t += 128
    return tn, thw


# ---------------------------------------------------------------------------
# Wrapper
# ---------------------------------------------------------------------------
def cse_forward(x_nchw, params):
    """x_nchw: (N, C, H, W) float32. Returns (N, C, 1, 1) float32."""
    N, C, H, W = x_nchw.shape
    HW = H * W
    x_flat = x_nchw.reshape(N, C, HW).astype(jnp.float32)

    w1, b1, s1, t1, w2, b2, s2, t2 = params
    Ch = w1.shape[1]  # C // 2

    # Fold BN (eval-mode scale/shift) and the 1/(H*W) mean divisor into the
    # conv weights/biases:
    #   bn1(conv1(sum/HW)) = sum @ (w1 * s1 / HW) + (b1*s1 + t1)
    #   bn2(conv2(h))      = h   @ (w2 * s2)      + (b2*s2 + t2)
    inv_hw = jnp.float32(1.0 / HW)
    w1f = (w1 * s1 * inv_hw).astype(jnp.float32)   # (C, Ch)
    b1f = (b1 * s1 + t1).astype(jnp.float32)       # (1, Ch)
    w2f = (w2 * s2).astype(jnp.float32)            # (Ch, C)
    b2f = (b2 * s2 + t2).astype(jnp.float32)       # (1, C)

    tn, thw = _pick_tiles(N, C, HW)
    grid = (pl.cdiv(N, tn), pl.cdiv(HW, thw))

    # VMEM budget: double-buffered x blocks + resident weights/acc/out + headroom.
    x_block_bytes = tn * C * thw * 4
    resident_bytes = 4 * (w1f.size + b1f.size + w2f.size + b2f.size + 2 * tn * C)
    vmem_limit = int(min(max(2 * x_block_bytes + 2 * resident_bytes + (4 << 20),
                             16 << 20),
                         48 << 20))

    cost = pl.CostEstimate(
        flops=int(N * C * HW + 2 * N * C * Ch + 2 * N * Ch * C),
        transcendentals=int(N * C),
        bytes_accessed=int(4 * (x_flat.size + w1f.size + b1f.size
                                + w2f.size + b2f.size + N * C)),
    )

    grid_spec = pltpu.PrefetchScalarGridSpec(
        num_scalar_prefetch=0,
        grid=grid,
        in_specs=[
            pl.BlockSpec((tn, C, thw), lambda i, k: (i, 0, k)),  # x tile
            pl.BlockSpec((C, Ch), lambda i, k: (0, 0)),          # w1'
            pl.BlockSpec((1, Ch), lambda i, k: (0, 0)),          # b1'
            pl.BlockSpec((Ch, C), lambda i, k: (0, 0)),          # w2'
            pl.BlockSpec((1, C), lambda i, k: (0, 0)),           # b2'
        ],
        out_specs=pl.BlockSpec((tn, C), lambda i, k: (i, 0)),    # resident over k
        scratch_shapes=[pltpu.VMEM((tn, C), jnp.float32)],
    )

    out = pl.pallas_call(
        _cse_kernel,
        out_shape=jax.ShapeDtypeStruct((N, C), jnp.float32),
        grid_spec=grid_spec,
        compiler_params=pltpu.CompilerParams(
            dimension_semantics=("parallel", "arbitrary"),
            vmem_limit_bytes=vmem_limit,
        ),
        cost_estimate=cost,
    )(x_flat, w1f, b1f, w2f, b2f)

    return out.reshape(N, C, 1, 1)


# ---------------------------------------------------------------------------
# Parameters (deterministic, matching the PyTorch module shapes)
# ---------------------------------------------------------------------------
def init_params(key, C):
    Ch = C // 2
    k1, k2, k3, k4 = jax.random.split(key, 4)
    eps = 1e-5

    # conv1: PyTorch weight (Ch, C, 1, 1) -> stored transposed (C, Ch) for matmul
    bound1 = 1.0 / jnp.sqrt(C)
    w1 = jax.random.uniform(k1, (C, Ch), jnp.float32, -bound1, bound1)
    b1 = jax.random.uniform(k2, (1, Ch), jnp.float32, -bound1, bound1)
    # BN1 eval-mode defaults: gamma=1, beta=0, running_mean=0, running_var=1
    s1 = jnp.full((1, Ch), 1.0 / jnp.sqrt(1.0 + eps), jnp.float32)  # gamma/sqrt(var+eps)
    t1 = jnp.zeros((1, Ch), jnp.float32)                            # beta - mean*scale

    # conv2: PyTorch weight (C, Ch, 1, 1) -> stored transposed (Ch, C)
    bound2 = 1.0 / jnp.sqrt(Ch)
    w2 = jax.random.uniform(k3, (Ch, C), jnp.float32, -bound2, bound2)
    b2 = jax.random.uniform(k4, (1, C), jnp.float32, -bound2, bound2)
    s2 = jnp.full((1, C), 1.0 / jnp.sqrt(1.0 + eps), jnp.float32)
    t2 = jnp.zeros((1, C), jnp.float32)

    return (w1, b1, s1, t1, w2, b2, s2, t2)


def cse_reference(x_nchw, params):
    """Pure-JAX reference (un-folded params) for correctness checking."""
    w1, b1, s1, t1, w2, b2, s2, t2 = params
    pooled = jnp.mean(x_nchw.astype(jnp.float32), axis=(2, 3))  # (N, C)
    h = pooled @ w1 + b1
    h = jnp.maximum(h * s1 + t1, 0.0)
    y = h @ w2 + b2
    y = jax.nn.sigmoid(y * s2 + t2)
    return y.reshape(x_nchw.shape[0], -1, 1, 1)


# ---------------------------------------------------------------------------
# Main
# ---------------------------------------------------------------------------
if __name__ == "__main__":
    key = jax.random.PRNGKey(0)

    # Small config matching the module spec (exercised shape).
    kx, kp, kx2, kp2 = jax.random.split(key, 4)
    N, C, H, W = 2, 4, 16, 16
    x = jax.random.normal(kx, (N, C, H, W), jnp.float32)
    params = init_params(kp, C)

    out = jax.block_until_ready(cse_forward(x, params))
    ref = cse_reference(x, params)
    assert out.shape == (N, C, 1, 1)
    assert jnp.allclose(out, ref, atol=1e-5, rtol=1e-5), "mismatch vs reference (small)"

    # Larger config to exercise the tiled grid / HW-axis accumulation.
    N2, C2, H2, W2 = 8, 256, 64, 64
    x2 = jax.random.normal(kx2, (N2, C2, H2, W2), jnp.float32)
    params2 = init_params(kp2, C2)

    out2 = jax.block_until_ready(cse_forward(x2, params2))
    ref2 = cse_reference(x2, params2)
    assert out2.shape == (N2, C2, 1, 1)
    assert jnp.allclose(out2, ref2, atol=1e-4, rtol=1e-4), "mismatch vs reference (tiled)"

    print("KERNEL_OK")
</pallas_src>

<mosaic_0001>
module attributes {stable_mosaic.version = 11 : i64} {
  func.func @_cse_kernel(%arg0: i32, %arg1: i32, %arg2: memref<2x4x256xf32, #tpu.memory_space<vmem>>, %arg3: memref<4x2xf32, #tpu.memory_space<vmem>>, %arg4: memref<1x2xf32, #tpu.memory_space<vmem>>, %arg5: memref<2x4xf32, #tpu.memory_space<vmem>>, %arg6: memref<1x4xf32, #tpu.memory_space<vmem>>, %arg7: memref<2x4xf32, #tpu.memory_space<vmem>>, %arg8: memref<2x4xf32, #tpu.memory_space<vmem>>) attributes {dimension_semantics = [#tpu.dimension_semantics<parallel>, #tpu.dimension_semantics<arbitrary>], iteration_bounds = array<i64: 1, 1>, scalar_prefetch = 0 : i64, scratch_operands = 1 : i64, tpu.core_type = #tpu.core_type<tc>, window_params = [{transform_indices = @transform_0, window_bounds = array<i64: 2, 4, 256>}, {pipeline_mode = #tpu.pipeline_mode<synchronous>, transform_indices = @transform_1, window_bounds = array<i64: 4, 2>}, {pipeline_mode = #tpu.pipeline_mode<synchronous>, transform_indices = @transform_2, window_bounds = array<i64: 1, 2>}, {pipeline_mode = #tpu.pipeline_mode<synchronous>, transform_indices = @transform_3, window_bounds = array<i64: 2, 4>}, {pipeline_mode = #tpu.pipeline_mode<synchronous>, transform_indices = @transform_4, window_bounds = array<i64: 1, 4>}, {transform_indices = @transform_5, window_bounds = array<i64: 2, 4>}]} {
    %c0_i32 = arith.constant 0 : i32
    %0 = arith.cmpi eq, %arg1, %c0_i32 : i32
    %1 = arith.extui %0 : i1 to i32
    %c0_i32_0 = arith.constant 0 : i32
    %2 = arith.cmpi ne, %1, %c0_i32_0 : i32
    scf.if %2 {
      %cst_9 = arith.constant 0.000000e+00 : f32
      %11 = vector.broadcast %cst_9 : f32 to vector<2x4xf32>
      %c0_10 = arith.constant 0 : index
      %c0_11 = arith.constant 0 : index
      %12 = vector.load %arg8[%c0_10, %c0_11] : memref<2x4xf32, #tpu.memory_space<vmem>>, vector<2x4xf32>
      tpu.vector_store %arg8[%c0_10, %c0_11], %11 {strides = array<i32>} : memref<2x4xf32, #tpu.memory_space<vmem>>, vector<2x4xf32>,
    } else {
    }
    %c0 = arith.constant 0 : index
    %c0_1 = arith.constant 0 : index
    %3 = vector.load %arg8[%c0, %c0_1] : memref<2x4xf32, #tpu.memory_space<vmem>>, vector<2x4xf32>
    %c0_2 = arith.constant 0 : index
    %c0_3 = arith.constant 0 : index
    %c0_4 = arith.constant 0 : index
    %4 = vector.load %arg2[%c0_2, %c0_3, %c0_4] : memref<2x4x256xf32, #tpu.memory_space<vmem>>, vector<2x4x256xf32>
    %cst = arith.constant dense<0.000000e+00> : vector<2x4xf32>
    %5 = vector.multi_reduction <add>, %4, %cst [2] : vector<2x4x256xf32> to vector<2x4xf32>
    %6 = arith.addf %3, %5 : vector<2x4xf32>
    %c0_5 = arith.constant 0 : index
    %c0_6 = arith.constant 0 : index
    %7 = vector.load %arg8[%c0_5, %c0_6] : memref<2x4xf32, #tpu.memory_space<vmem>>, vector<2x4xf32>
    tpu.vector_store %arg8[%c0_5, %c0_6], %6 {strides = array<i32>} : memref<2x4xf32, #tpu.memory_space<vmem>>, vector<2x4xf32>,
    %c0_i32_7 = arith.constant 0 : i32
    %8 = arith.cmpi eq, %arg1, %c0_i32_7 : i32
    %9 = arith.extui %8 : i1 to i32
    %c0_i32_8 = arith.constant 0 : i32
    %10 = arith.cmpi ne, %9, %c0_i32_8 : i32
    scf.if %10 {
      %c0_9 = arith.constant 0 : index
      %c0_10 = arith.constant 0 : index
      %11 = vector.load %arg8[%c0_9, %c0_10] : memref<2x4xf32, #tpu.memory_space<vmem>>, vector<2x4xf32>
      %c0_11 = arith.constant 0 : index
      %c0_12 = arith.constant 0 : index
      %12 = vector.load %arg3[%c0_11, %c0_12] : memref<4x2xf32, #tpu.memory_space<vmem>>, vector<4x2xf32>
      %cst_13 = arith.constant dense<0.000000e+00> : vector<2x2xf32>
      %13 = tpu.matmul %11, %12, %cst_13 {dimension_numbers = #tpu.dot_dimension_numbers<[1], [0], [0], [1], [0, 0, 1, 1], [], []>} : vector<2x4xf32>, vector<4x2xf32>, vector<2x2xf32> -> vector<2x2xf32>
      %c0_14 = arith.constant 0 : index
      %c0_15 = arith.constant 0 : index
      %14 = vector.load %arg4[%c0_14, %c0_15] : memref<1x2xf32, #tpu.memory_space<vmem>>, vector<1x2xf32>
      %15 = vector.broadcast %14 : vector<1x2xf32> to vector<2x2xf32>
      %16 = arith.addf %13, %15 : vector<2x2xf32>
      %cst_16 = arith.constant 0.000000e+00 : f32
      %17 = vector.broadcast %cst_16 : f32 to vector<2x2xf32>
      %18 = arith.maximumf %16, %17 : vector<2x2xf32>
      %c0_17 = arith.constant 0 : index
      %c0_18 = arith.constant 0 : index
      %19 = vector.load %arg5[%c0_17, %c0_18] : memref<2x4xf32, #tpu.memory_space<vmem>>, vector<2x4xf32>
      %cst_19 = arith.constant dense<0.000000e+00> : vector<2x4xf32>
      %20 = tpu.matmul %18, %19, %cst_19 {dimension_numbers = #tpu.dot_dimension_numbers<[1], [0], [0], [1], [0, 0, 1, 1], [], []>} : vector<2x2xf32>, vector<2x4xf32>, vector<2x4xf32> -> vector<2x4xf32>
      %c0_20 = arith.constant 0 : index
      %c0_21 = arith.constant 0 : index
      %21 = vector.load %arg6[%c0_20, %c0_21] : memref<1x4xf32, #tpu.memory_space<vmem>>, vector<1x4xf32>
      %22 = vector.broadcast %21 : vector<1x4xf32> to vector<2x4xf32>
      %23 = arith.addf %20, %22 : vector<2x4xf32>
      %24 = arith.negf %23 : vector<2x4xf32>
      %25 = math.exp %24 : vector<2x4xf32>
      %cst_22 = arith.constant 1.000000e+00 : f32
      %26 = vector.broadcast %cst_22 : f32 to vector<2x4xf32>
      %27 = arith.addf %26, %25 : vector<2x4xf32>
      %28 = arith.divf %26, %27 : vector<2x4xf32>
      %c0_23 = arith.constant 0 : index
      %c0_24 = arith.constant 0 : index
      %29 = vector.load %arg7[%c0_23, %c0_24] : memref<2x4xf32, #tpu.memory_space<vmem>>, vector<2x4xf32>
      tpu.vector_store %arg7[%c0_23, %c0_24], %28 {strides = array<i32>} : memref<2x4xf32, #tpu.memory_space<vmem>>, vector<2x4xf32>,
    } else {
    }
    return
  }
  func.func @transform_0(%arg0: i32, %arg1: i32) -> (i32, i32, i32) {
    %c0_i32 = arith.constant 0 : i32
    %c0_i32_0 = arith.constant 0 : i32
    return %arg0, %c0_i32, %arg1 : i32, i32, i32
  }
  func.func @transform_1(%arg0: i32, %arg1: i32) -> (i32, i32) {
    %c0_i32 = arith.constant 0 : i32
    %c0_i32_0 = arith.constant 0 : i32
    %c0_i32_1 = arith.constant 0 : i32
    return %c0_i32, %c0_i32_0 : i32, i32
  }
  func.func @transform_2(%arg0: i32, %arg1: i32) -> (i32, i32) {
    %c0_i32 = arith.constant 0 : i32
    %c0_i32_0 = arith.constant 0 : i32
    %c0_i32_1 = arith.constant 0 : i32
    return %c0_i32, %c0_i32_0 : i32, i32
  }
  func.func @transform_3(%arg0: i32, %arg1: i32) -> (i32, i32) {
    %c0_i32 = arith.constant 0 : i32
    %c0_i32_0 = arith.constant 0 : i32
    %c0_i32_1 = arith.constant 0 : i32
    return %c0_i32, %c0_i32_0 : i32, i32
  }
  func.func @transform_4(%arg0: i32, %arg1: i32) -> (i32, i32) {
    %c0_i32 = arith.constant 0 : i32
    %c0_i32_0 = arith.constant 0 : i32
    %c0_i32_1 = arith.constant 0 : i32
    return %c0_i32, %c0_i32_0 : i32, i32
  }
  func.func @transform_5(%arg0: i32, %arg1: i32) -> (i32, i32) {
    %c0_i32 = arith.constant 0 : i32
    %c0_i32_0 = arith.constant 0 : i32
    return %arg0, %c0_i32 : i32, i32
  }
}

</mosaic_0001>

<llo_original>
// kernel: tpu_custom_call.1
$region0: #{tpu_custom_call.1}
  #allocation0 [shape = 'u32[]', space=smem, size = 0x4, offset = 0x4, fixed_abs, tag = 'smem constant byte address 0x4 - core index']
  #allocation1 [shape = 'u32[144,128]{1,0:T(1,128)}', space=vmem, size = 0x12000, scoped, tag = 'internal scratch']
  #allocation2 [shape = 'f32[2,4]{1,0:T(2,128)}', space=vmem, size = 0x400, scoped, tag = 'scratch operand']
  %s0 = inlined_call_operand.hbm [shape: f32[2,4,256], index: 0, kind: input, shape index: {}]
  %s1 = inlined_call_operand.vmem [shape: f32[4,2], index: 1, kind: input, shape index: {}]
  %s2 = inlined_call_operand.vmem [shape: f32[1,2], index: 2, kind: input, shape index: {}]
  %s3 = inlined_call_operand.vmem [shape: f32[2,4], index: 3, kind: input, shape index: {}]
  %s4 = inlined_call_operand.vmem [shape: f32[1,4], index: 4, kind: input, shape index: {}]
  %s5 = inlined_call_operand.hbm [shape: f32[2,4], index: 5, kind: output, shape index: {}]
  %s6 = sld [smem:[#allocation0]]
  $region42: #{tpu_custom_call.1} parent=0
    _
  %s8 = ssub.s32 1, %s6
  %s9 = scalar_select 0, %s8, %s6
  $region1: #{tpu_custom_call.1} parent=0
    #allocation3 [shape = 'u8[8192]{0}', space=vmem, size = 0x2000, scoped, tag = 'input window, operand 0, single buffered']
    #allocation4 [shape = 's32[1]{0}', space=sflag, size = 0x4, scoped, tag = 'scoped memory for tpu_custom_call.1']
    #allocation5 [shape = 's32[1]{0}', space=sflag, size = 0x4, scoped, tag = 'scoped memory for tpu_custom_call.1']
    #allocation6 [shape = 'u8[1024]{0}', space=vmem, size = 0x400, scoped, tag = 'output window, operand 0, single buffered']
    %10 = vsyncpa [#allocation4], 0
    %11 = vsyncpa [#allocation5], 0
    // Predicated region
    $region2: #{tpu_custom_call.1} parent=1 // pred_check
      _
    $region3: #{tpu_custom_call.1} parent=1 // pred_check_branch
      %13 = sbr.rel (0) target = $region5
    $region4: #{tpu_custom_call.1} parent=1 // pred_region
      %s15 = ssub.s32 256, 256
      %16 = vsyncadd [#allocation4], %s15
      %s17 = sshll.u32 [#allocation3], 4
      %s18 = int_to_ptr.vmem [resolvable:$true] %s17
      %23 = dma.hbm_to_vmem [thread:$0]  %s0, 256, %s18, [#allocation4], 128, 128, 8
    $region5: #{tpu_custom_call.1} parent=1 // pred_fallthru
      _
    // Predicated region
    $region6: #{tpu_custom_call.1} parent=1 // pred_check
      _
    $region7: #{tpu_custom_call.1} parent=1 // pred_check_branch
      %25 = sbr.rel (0) target = $region9
    $region8: #{tpu_custom_call.1} parent=1 // pred_region
      _
    $region9: #{tpu_custom_call.1} parent=1 // pred_fallthru
      _
    // Predicated region
    $region10: #{tpu_custom_call.1} parent=1 // pred_check
      _
    $region11: #{tpu_custom_call.1} parent=1 // pred_check_branch
      %27 = sbr.rel (0) target = $region13
    $region12: #{tpu_custom_call.1} parent=1 // pred_region
      _
    $region13: #{tpu_custom_call.1} parent=1 // pred_fallthru
      _
    // Predicated region
    $region14: #{tpu_custom_call.1} parent=1 // pred_check
      _
    $region15: #{tpu_custom_call.1} parent=1 // pred_check_branch
      %29 = sbr.rel (0) target = $region17
    $region16: #{tpu_custom_call.1} parent=1 // pred_region
      _
    $region17: #{tpu_custom_call.1} parent=1 // pred_fallthru
      _
    // Predicated region
    $region18: #{tpu_custom_call.1} parent=1 // pred_check
      _
    $region19: #{tpu_custom_call.1} parent=1 // pred_check_branch
      %31 = sbr.rel (0) target = $region21
    $region20: #{tpu_custom_call.1} parent=1 // pred_region
      _
    $region21: #{tpu_custom_call.1} parent=1 // pred_fallthru
      _
    // Predicated region
    $region22: #{tpu_custom_call.1} parent=1 // pred_check
      _
    $region23: #{tpu_custom_call.1} parent=1 // pred_check_branch
      %33 = sbr.rel (0) target = $region25
    $region24: #{tpu_custom_call.1} parent=1 // pred_region
      %34 = dma.done [#allocation4], 256
    $region25: #{tpu_custom_call.1} parent=1 // pred_fallthru
      _
    %p35 = scmp.eq.s32.totalorder 0, 0
    // Predicated region
    $region26: #{tpu_custom_call.1} parent=1 // pred_check
      %p36 = pneg %p35
    $region27: #{tpu_custom_call.1} parent=1 // pred_check_branch
      %38 = sbr.rel (%p36) target = $region29
    $region28: #{tpu_custom_call.1} parent=1 // pred_region
      %vm39 = vcmask 25600
      %40 = vst.msk [vmem:[#allocation2] sm:$0x3] %vm39, 0.0
    $region29: #{tpu_custom_call.1} parent=1 // pred_fallthru
      _
    %v41 = vld [vmem:[#allocation2] sm:$0x3]
    %v42 = vld [vmem:[#allocation3] sm:$0xff]
    %v43 = vld [vmem:[#allocation3 + $0x8] sm:$0xff]
    %v46 = vcombine.high %v42, %v42
    %v47 = vcombine.high %v43, %v43
    %vm50 = vcmask 1043456
    %v51 = vsel %vm50, %v42, 0.0
    %v52 = vsel %vm50, %v46, 0.0
    %v53 = vadd.f32 %v51, %v52
    %54 = vadd.xlane.f32.xlu0 %v53
    %v55 = vpop.xlane.xlu0 %54
    %v56 = vsel %vm50, %v43, 0.0
    %v57 = vsel %vm50, %v47, 0.0
    %v58 = vadd.f32 %v56, %v57
    %59 = vadd.xlane.f32.xlu0 %v58
    %v60 = vpop.xlane.xlu0 %59
    %v63 = vlaneseq
    %v64 = vand.u32 %v63, 127
    %v65 = vlaneseq
    %v66 = vshrl.u32 %v65, 7
    %v67 = vsub.s32 %v64, %v66
    %v68 = vrot.slane %v55, %v67
    %v69 = vlaneseq
    %v70 = vshrl.u32 %v69, 7
    %v71 = vsub.s32 %v64, %v70
    %v72 = vrot.slane %v60, %v71
    %vm73 = vcmask 1041409
    %v74 = vsel %vm73, %v72, %v68
    %v76 = vadd.f32 %v41, %v74
    %vm77 = vcmask 25600
    %78 = vst.msk [vmem:[#allocation2] sm:$0x3] %vm77, %v76
    // Predicated region
    $region30: #{tpu_custom_call.1} parent=1 // pred_check
      %p79 = pneg %p35
    $region31: #{tpu_custom_call.1} parent=1 // pred_check_branch
      %81 = sbr.rel (%p79) target = $region33
    $region32: #{tpu_custom_call.1} parent=1 // pred_region
      %v82 = vld [vmem:[#allocation2] sm:$0x3]
      %v83 = vld [vmem:[%s1] sm:$0xf]
      %v84 = vld [vmem:[%s2] sm:$0x1]
      %v86 = vlaneseq
      %v87 = vshrl.u32 %v86, 7
      %v88 = vsub.s32 0, %v87
      %v89 = vrot.slane %v84, %v88
      %vm91 = vcmask 31744
      %v93 = vsel %vm91, %v82, 0
      %v96 = vsel %vm50, %v83, 0
      %98 = vmatprep.subr.mxu0 0.0
      %99 = vmatpush1.msra.mxu0 0.0
      %100 = vmatprep.subr.mxu0 0.0
      %101 = vmatpush1.msra.mxu0 0.0
      %102 = vmatprep.subr.mxu0 0.0
      %103 = vmatpush1.msra.mxu0 0.0
      %104 = vmatprep.subr.mxu0 0.0
      %105 = vmatpush1.msra.mxu0 0.0
      %106 = vmatprep.subr.mxu0 0.0
      %107 = vmatpush1.msra.mxu0 0.0
      %108 = vmatprep.subr.mxu0 0.0
      %109 = vmatpush1.msra.mxu0 0.0
      %110 = vmatprep.subr.mxu0 0.0
      %111 = vmatpush1.msra.mxu0 0.0
      %112 = vmatprep.subr.mxu0 0.0
      %113 = vmatpush1.msra.mxu0 0.0
      %114 = vmatprep.subr.mxu0 0.0
      %115 = vmatpush1.msra.mxu0 0.0
      %116 = vmatprep.subr.mxu0 0.0
      %117 = vmatpush1.msra.mxu0 0.0
      %118 = vmatprep.subr.mxu0 0.0
      %119 = vmatpush1.msra.mxu0 0.0
      %120 = vmatprep.subr.mxu0 0.0
      %121 = vmatpush1.msra.mxu0 0.0
      %122 = vmatprep.subr.mxu0 0.0
      %123 = vmatpush1.msra.mxu0 0.0
      %124 = vmatprep.subr.mxu0 0.0
      %125 = vmatpush1.msra.mxu0 0.0
      %126 = vmatprep.subr.mxu0 0.0
      %127 = vmatpush1.msra.mxu0 0.0
      %128 = vmatprep.subr.mxu0 0.0
      %129 = vmatpush1.msra.mxu0 %v96
      %130 = vmatprep.subr.mxu0 0.0
      %131 = vmatpush2.msra.mxu0 0.0
      %132 = vmatprep.subr.mxu0 0.0
      %133 = vmatpush2.msra.mxu0 0.0
      %134 = vmatprep.subr.mxu0 0.0
      %135 = vmatpush2.msra.mxu0 0.0
      %136 = vmatprep.subr.mxu0 0.0
      %137 = vmatpush2.msra.mxu0 0.0
      %138 = vmatprep.subr.mxu0 0.0
      %139 = vmatpush2.msra.mxu0 0.0
      %140 = vmatprep.subr.mxu0 0.0
      %141 = vmatpush2.msra.mxu0 0.0
      %142 = vmatprep.subr.mxu0 0.0
      %143 = vmatpush2.msra.mxu0 0.0
      %144 = vmatprep.subr.mxu0 0.0
      %145 = vmatpush2.msra.mxu0 0.0
      %146 = vmatprep.subr.mxu0 0.0
      %147 = vmatpush2.msra.mxu0 0.0
      %148 = vmatprep.subr.mxu0 0.0
      %149 = vmatpush2.msra.mxu0 0.0
      %150 = vmatprep.subr.mxu0 0.0
      %151 = vmatpush2.msra.mxu0 0.0
      %152 = vmatprep.subr.mxu0 0.0
      %153 = vmatpush2.msra.mxu0 0.0
      %154 = vmatprep.subr.mxu0 0.0
      %155 = vmatpush2.msra.mxu0 0.0
      %156 = vmatprep.subr.mxu0 0.0
      %157 = vmatpush2.msra.mxu0 0.0
      %158 = vmatprep.subr.mxu0 0.0
      %159 = vmatpush2.msra.mxu0 0.0
      %160 = vmatprep.subr.mxu0 0.0
      %161 = vmatpush2.msra.mxu0 0.0
      %162 = vmatprep.mubr.f32.mxu0 0.0
      %163 = vmatmul.mubr.f32.gmra.mxu0 %v93
      %v164 = vpop.f32.mrf.mxu0
      %v165 = vadd.f32 %v89, %v164
      %v166 = vpop.f32.mrf.mxu0
      %167 = vdwg.mxu0
      %v168 = vmax.f32 %v165, 0.0
      %v169 = vld [vmem:[%s3] sm:$0x3]
      %v170 = vld [vmem:[%s4] sm:$0x1]
      %v172 = vlaneseq
      %v173 = vshrl.u32 %v172, 7
      %v174 = vsub.s32 0, %v173
      %v175 = vrot.slane %v170, %v174
      %vm177 = vcmask 15360
      %v179 = vsel %vm177, %v168, 0
      %vm181 = vcmask 1041408
      %v183 = vsel %vm181, %v169, 0
      %185 = vmatprep.subr.mxu0 0.0
      %186 = vmatpush1.msra.mxu0 0.0
      %187 = vmatprep.subr.mxu0 0.0
      %188 = vmatpush1.msra.mxu0 0.0
      %189 = vmatprep.subr.mxu0 0.0
      %190 = vmatpush1.msra.mxu0 0.0
      %191 = vmatprep.subr.mxu0 0.0
      %192 = vmatpush1.msra.mxu0 0.0
      %193 = vmatprep.subr.mxu0 0.0
      %194 = vmatpush1.msra.mxu0 0.0
      %195 = vmatprep.subr.mxu0 0.0
      %196 = vmatpush1.msra.mxu0 0.0
      %197 = vmatprep.subr.mxu0 0.0
      %198 = vmatpush1.msra.mxu0 0.0
      %199 = vmatprep.subr.mxu0 0.0
      %200 = vmatpush1.msra.mxu0 0.0
      %201 = vmatprep.subr.mxu0 0.0
      %202 = vmatpush1.msra.mxu0 0.0
      %203 = vmatprep.subr.mxu0 0.0
      %204 = vmatpush1.msra.mxu0 0.0
      %205 = vmatprep.subr.mxu0 0.0
      %206 = vmatpush1.msra.mxu0 0.0
      %207 = vmatprep.subr.mxu0 0.0
      %208 = vmatpush1.msra.mxu0 0.0
      %209 = vmatprep.subr.mxu0 0.0
      %210 = vmatpush1.msra.mxu0 0.0
      %211 = vmatprep.subr.mxu0 0.0
      %212 = vmatpush1.msra.mxu0 0.0
      %213 = vmatprep.subr.mxu0 0.0
      %214 = vmatpush1.msra.mxu0 0.0
      %215 = vmatprep.subr.mxu0 0.0
      %216 = vmatpush1.msra.mxu0 %v183
      %217 = vmatprep.subr.mxu0 0.0
      %218 = vmatpush2.msra.mxu0 0.0
      %219 = vmatprep.subr.mxu0 0.0
      %220 = vmatpush2.msra.mxu0 0.0
      %221 = vmatprep.subr.mxu0 0.0
      %222 = vmatpush2.msra.mxu0 0.0
      %223 = vmatprep.subr.mxu0 0.0
      %224 = vmatpush2.msra.mxu0 0.0
      %225 = vmatprep.subr.mxu0 0.0
      %226 = vmatpush2.msra.mxu0 0.0
      %227 = vmatprep.subr.mxu0 0.0
      %228 = vmatpush2.msra.mxu0 0.0
      %229 = vmatprep.subr.mxu0 0.0
      %230 = vmatpush2.msra.mxu0 0.0
      %231 = vmatprep.subr.mxu0 0.0
      %232 = vmatpush2.msra.mxu0 0.0
      %233 = vmatprep.subr.mxu0 0.0
      %234 = vmatpush2.msra.mxu0 0.0
      %235 = vmatprep.subr.mxu0 0.0
      %236 = vmatpush2.msra.mxu0 0.0
      %237 = vmatprep.subr.mxu0 0.0
      %238 = vmatpush2.msra.mxu0 0.0
      %239 = vmatprep.subr.mxu0 0.0
      %240 = vmatpush2.msra.mxu0 0.0
      %241 = vmatprep.subr.mxu0 0.0
      %242 = vmatpush2.msra.mxu0 0.0
      %243 = vmatprep.subr.mxu0 0.0
      %244 = vmatpush2.msra.mxu0 0.0
      %245 = vmatprep.subr.mxu0 0.0
      %246 = vmatpush2.msra.mxu0 0.0
      %247 = vmatprep.subr.mxu0 0.0
      %248 = vmatpush2.msra.mxu0 0.0
      %249 = vmatprep.mubr.f32.mxu0 0.0
      %250 = vmatmul.mubr.f32.gmra.mxu0 %v179
      %v251 = vpop.f32.mrf.mxu0
      %v252 = vadd.f32 %v175, %v251
      %v253 = vpop.f32.mrf.mxu0
      %254 = vdwg.mxu0
      %v255 = vxor.u32 %v252, 2147483648
      %v256 = vmul.f32 %v255, 1.442695
      %v257 = vpow.pop %v256
      %v258 = vadd.f32 %v257, 1.0
      %v259 = vrcp.pop %v258
      %v260 = vmul.f32 1.0, %v259
      %261 = vst.msk [vmem:[#allocation6] sm:$0x3] %vm77, %v260
    $region33: #{tpu_custom_call.1} parent=1 // pred_fallthru
      _
    // Predicated region
    $region34: #{tpu_custom_call.1} parent=1 // pred_check
      _
    $region35: #{tpu_custom_call.1} parent=1 // pred_check_branch
      %263 = sbr.rel (0) target = $region37
    $region36: #{tpu_custom_call.1} parent=1 // pred_region
      %s265 = ssub.s32 32, 32
      %266 = vsyncadd [#allocation5], %s265
      %s268 = sshll.u32 [#allocation6], 4
      %s269 = int_to_ptr.vmem [resolvable:$true] %s268
      %271 = dma.vmem_to_hbm [thread:$0]  %s269, 32, %s5, [#allocation5]
    $region37: #{tpu_custom_call.1} parent=1 // pred_fallthru
      _
    // Predicated region
    $region38: #{tpu_custom_call.1} parent=1 // pred_check
      _
    $region39: #{tpu_custom_call.1} parent=1 // pred_check_branch
      %273 = sbr.rel (0) target = $region41
    $region40: #{tpu_custom_call.1} parent=1 // pred_region
      %274 = dma.done [#allocation5], 32
    $region41: #{tpu_custom_call.1} parent=1 // pred_fallthru
      _
    %275 = vsyncpa [#allocation4], 1
    %276 = vsyncpa [#allocation5], 1

</llo_original>
